<compile_context>
chip_gen: v5e
topology: v5e:2x2
jax: 0.10.0
libtpu: 0.0.40
codegen_flags: <defaults>
</compile_context>

<pallas_src>
import numpy as np
import jax
import jax.numpy as jnp
from jax.experimental import pallas as pl
from jax.experimental.pallas import tpu as pltpu

# Tile defaults (single config safe on every generation):
#   S tile = tk*tl bf16 = 8 MiB; triple-buffered -> 24 MiB; plus resident X and
#   the (Bp, tl) f32 output block stays well under the 48 MiB VMEM limit below
#   (which itself fits v7x's 64 MiB/TC and leaves big headroom on v5e/v6e's
#   128 MiB).  For production siglen (88200) Lp//tl >= 2, so the "parallel"
#   L axis still feeds both v7x TensorCores.
_TK = 1024
_TL = 4096
_VMEM_LIMIT = 48 * 1024 * 1024
_X_RESIDENT_MAX_BYTES = 8 * 1024 * 1024


def _round_up(x, m):
    return ((x + m - 1) // m) * m


def _tile_sizes(Kc, L, tk=_TK, tl=_TL):
    """Clamp tiles to the (128-rounded) problem and return padded extents."""
    tk = min(tk, _round_up(Kc, 128))
    tl = min(tl, _round_up(L, 128))
    Kp = _round_up(Kc, tk)
    Lp = _round_up(L, tl)
    return tk, tl, Kp, Lp


# ----------------------------------------------------------------------------
# Pallas kernel: fused synthesis matmul, K-tiled reduction directly into the
# resident f32 output block.   y[:, jL] += X_cat[:, kK] @ S_cat[kK, jL]
# Grid = (L tiles ["parallel"], K tiles ["arbitrary", last]).
# ----------------------------------------------------------------------------
def _insgt_matmul(x_cat, s_cat_padded, Kc, L, tk, tl):
    """(B, Kc) @ (Kp, Lp)[pre-padded] -> (B, L) f32; bf16 operands, f32 MXU acc."""
    B, Kc_in = x_cat.shape
    assert Kc_in == Kc
    Kp, Lp = s_cat_padded.shape
    assert Kp % tk == 0 and Lp % tl == 0 and Kp >= Kc and Lp >= L

    # Pad rows to a sublane multiple (no masked vst) and K columns to the
    # operator's padded K.  X is tiny, so this per-call pad is cheap.
    Bp = _round_up(B, 8)
    if Bp != B or Kp != Kc:
        x_cat = jnp.pad(x_cat, ((0, Bp - B), (0, Kp - Kc)))

    grid = (Lp // tl, Kp // tk)
    n_s_blocks = grid[0] * grid[1]
    x_resident = Bp * Kp * x_cat.dtype.itemsize <= _X_RESIDENT_MAX_BYTES

    def kernel(x_ref, s_ref, y_ref):
        k = pl.program_id(1)
        if x_resident:
            # Whole X_cat lives in VMEM (constant block index); slice the
            # current K chunk in-register instead of re-DMAing it per step.
            start = pl.multiple_of(k * tk, 128)
            x_blk = x_ref[:, pl.ds(start, tk)]
        else:
            x_blk = x_ref[...]
        part = jnp.dot(x_blk, s_ref[...], preferred_element_type=jnp.float32)

        @pl.when(k == 0)
        def _():
            y_ref[...] = part

        @pl.when(k > 0)
        def _():
            y_ref[...] += part

    if x_resident:
        x_spec = pl.BlockSpec((Bp, Kp), lambda j, k: (0, 0))
    else:
        x_spec = pl.BlockSpec((Bp, tk), lambda j, k: (0, k))

    if n_s_blocks >= 3:
        # Compute per step is trivial; a third S buffer hides DMA issue
        # latency / output-writeback contention (largest win on v7x).
        s_spec = pl.BlockSpec((tk, tl), lambda j, k: (k, j),
                              pipeline_mode=pl.Buffered(3))
    else:
        s_spec = pl.BlockSpec((tk, tl), lambda j, k: (k, j))

    dbytes = s_cat_padded.dtype.itemsize
    cost = pl.CostEstimate(
        flops=2 * Bp * Kp * Lp,
        transcendentals=0,
        bytes_accessed=int(Kp * Lp * dbytes + Bp * Kp * dbytes + Bp * Lp * 4),
    )

    out = pl.pallas_call(
        kernel,
        out_shape=jax.ShapeDtypeStruct((Bp, Lp), jnp.float32),
        grid_spec=pltpu.PrefetchScalarGridSpec(
            num_scalar_prefetch=0,
            grid=grid,
            in_specs=[x_spec, s_spec],
            out_specs=pl.BlockSpec((Bp, tl), lambda j, k: (0, j)),
        ),
        compiler_params=pltpu.CompilerParams(
            dimension_semantics=("parallel", "arbitrary"),
            vmem_limit_bytes=_VMEM_LIMIT,
        ),
        cost_estimate=cost,
    )(x_cat, s_cat_padded)

    return out[:B, :L]


# ----------------------------------------------------------------------------
# Glue: build a small NSGT-like complex synthesis operator (deterministic).
# For each band k: frame-DFT, multiply by a Hann dual window, place the band
# at its center frequency in the full spectrum, inverse (hermitian) rDFT.
# ----------------------------------------------------------------------------
def build_synthesis_operator(nbins, nframes, siglen):
    # TODO(synk): real module derives band placement from BarkScale + the nsgt
    # library; here band centers are a simple deterministic grid (synthetic),
    # and DC/Nyquist bands keep the uniform 2/NN Hermitian scale.
    NN = siglen
    t = np.arange(NN)
    j = np.arange(nframes)
    g = 0.5 - 0.5 * np.cos(2.0 * np.pi * (j + 0.5) / nframes)          # Hann dual window
    centers = np.round(np.linspace(0, NN // 2, nbins)).astype(np.int64)

    S = np.zeros((nbins, nframes, siglen), dtype=np.complex128)
    Dm = np.exp(-2j * np.pi * np.outer(np.arange(nframes), j) / nframes)  # (m, j)
    for k in range(nbins):
        n = (centers[k] - nframes // 2 + j) % NN                           # band freq bins
        E = np.exp(2j * np.pi * np.outer(n, t) / NN) * (2.0 / NN)          # (j, t)
        S[k] = (Dm * g[None, :]) @ E                                       # (m, t)

    Sflat = S.reshape(nbins * nframes, siglen)
    return (np.real(Sflat).astype(np.float32),
            np.imag(Sflat).astype(np.float32))


def pack_synthesis_operator(Sr, Si, dtype=jnp.bfloat16, tk=_TK, tl=_TL):
    """Fuse (Sr, Si) into one operator (y = X_cat @ S_cat with the minus sign
    folded into the imaginary half), pre-padded ONCE on the host to the tile
    grid so no per-call jnp.pad re-materializes the big operator in HBM.
    Cast to bf16: the kernel is purely S-bandwidth bound."""
    S_cat = np.concatenate([Sr, -Si], axis=0)          # (2K, L)
    Kc, L = S_cat.shape
    tk, tl, Kp, Lp = _tile_sizes(Kc, L, tk, tl)
    S_pad = np.zeros((Kp, Lp), dtype=np.float32)
    S_pad[:Kc, :L] = S_cat
    # TODO(synk): optional int8 (v5e/v6e) or fp8-e4m3 (v7x) quantization of S
    # with per-row scales would halve streamed bytes again, accuracy permitting.
    return {
        "s_cat": jnp.asarray(S_pad, dtype=dtype),   # (Kp, Lp), tile-aligned
        "K": Kc,
        "L": L,
        "tk": tk,
        "tl": tl,
    }


# ----------------------------------------------------------------------------
# INSGT_SL.forward equivalent
# ----------------------------------------------------------------------------
def insgt_sl_forward(X, packed):
    """X: (..., nb_bins, nb_frames, 2) float32 -> (..., siglen) float32."""
    assert X.shape[-1] == 2, "last axis must be stacked real/imag"
    cshape = X.shape[:-1]                 # complex-view shape
    nb_bins, nb_frames = cshape[-2], cshape[-1]
    lead = cshape[:-2]                    # (samples, [targets], channels)
    b_flat = int(np.prod(lead, dtype=np.int64))
    K = nb_bins * nb_frames
    assert 2 * K == packed["K"], "operator / input (bins, frames) mismatch"
    Xr = X[..., 0].reshape(b_flat, K)
    Xi = X[..., 1].reshape(b_flat, K)
    x_cat = jnp.concatenate([Xr, Xi], axis=1).astype(packed["s_cat"].dtype)
    y = _insgt_matmul(x_cat, packed["s_cat"], packed["K"], packed["L"],
                      packed["tk"], packed["tl"])                 # (b_flat, L) f32
    return y.reshape(*lead, -1)


if __name__ == "__main__":
    # Small synthetic NSGT config (mirrors fbins_actual = fbins + 1)
    fbins = 8
    nb_bins = fbins + 1        # 9
    nb_frames = 16             # M = nsgt.ncoefs
    siglen = 250               # deliberately NOT a multiple of 128 (tail path)
    nb_samples, nb_channels = 2, 2

    Sr_np, Si_np = build_synthesis_operator(nb_bins, nb_frames, siglen)
    packed = pack_synthesis_operator(Sr_np, Si_np)     # pre-padded (Kp, Lp) bf16

    key = jax.random.PRNGKey(0)
    X = jax.random.normal(
        key, (nb_samples, nb_channels, nb_bins, nb_frames, 2), dtype=jnp.float32
    )

    y = insgt_sl_forward(X, packed)
    y = jax.block_until_ready(y)
    assert y.shape == (nb_samples, nb_channels, siglen), y.shape

    # Reference: same bf16-rounded operands, f32 math in numpy.
    K = nb_bins * nb_frames
    Xn = np.asarray(X)
    Xc = np.concatenate(
        [Xn[..., 0].reshape(-1, K), Xn[..., 1].reshape(-1, K)], axis=1
    )
    Xc_b = np.asarray(jnp.asarray(Xc).astype(jnp.bfloat16).astype(jnp.float32))
    Sc_b = np.asarray(packed["s_cat"][:2 * K, :siglen].astype(jnp.float32))
    y_ref = (Xc_b @ Sc_b).reshape(nb_samples, nb_channels, siglen)
    assert np.allclose(np.asarray(y), y_ref, rtol=2e-2, atol=2e-2)

    print("KERNEL_OK")
</pallas_src>

<mosaic_0001>
module attributes {stable_mosaic.version = 11 : i64} {
  func.func @kernel(%arg0: i32, %arg1: i32, %arg2: memref<8x384xbf16, #tpu.memory_space<vmem>>, %arg3: memref<384x256xbf16, #tpu.memory_space<vmem>>, %arg4: memref<8x256xf32, #tpu.memory_space<vmem>>) attributes {dimension_semantics = [#tpu.dimension_semantics<parallel>, #tpu.dimension_semantics<arbitrary>], iteration_bounds = array<i64: 1, 1>, scalar_prefetch = 0 : i64, scratch_operands = 0 : i64, tpu.core_type = #tpu.core_type<tc>, window_params = [{pipeline_mode = #tpu.pipeline_mode<synchronous>, transform_indices = @transform_0, window_bounds = array<i64: 8, 384>}, {transform_indices = @transform_1, window_bounds = array<i64: 384, 256>}, {transform_indices = @transform_2, window_bounds = array<i64: 8, 256>}]} {
    %c384_i32 = arith.constant 384 : i32
    %0 = arith.muli %arg1, %c384_i32 : i32
    %1 = tpu.assume_multiple %0, 128 : i32
    %c0 = arith.constant 0 : index
    %2 = arith.index_cast %1 : i32 to index
    %3 = vector.load %arg2[%c0, %2] : memref<8x384xbf16, #tpu.memory_space<vmem>>, vector<8x384xbf16>
    %c0_0 = arith.constant 0 : index
    %c0_1 = arith.constant 0 : index
    %4 = vector.load %arg3[%c0_0, %c0_1] : memref<384x256xbf16, #tpu.memory_space<vmem>>, vector<384x256xbf16>
    %cst = arith.constant dense<0.000000e+00> : vector<8x256xf32>
    %5 = tpu.matmul %3, %4, %cst {dimension_numbers = #tpu.dot_dimension_numbers<[1], [0], [0], [1], [0, 0, 1, 1], [], []>} : vector<8x384xbf16>, vector<384x256xbf16>, vector<8x256xf32> -> vector<8x256xf32>
    %c0_i32 = arith.constant 0 : i32
    %6 = arith.cmpi eq, %arg1, %c0_i32 : i32
    %7 = arith.extui %6 : i1 to i32
    %c0_i32_2 = arith.constant 0 : i32
    %8 = arith.cmpi ne, %7, %c0_i32_2 : i32
    scf.if %8 {
      %c0_5 = arith.constant 0 : index
      %c0_6 = arith.constant 0 : index
      %12 = vector.load %arg4[%c0_5, %c0_6] : memref<8x256xf32, #tpu.memory_space<vmem>>, vector<8x256xf32>
      tpu.vector_store %arg4[%c0_5, %c0_6], %5 {strides = array<i32>} : memref<8x256xf32, #tpu.memory_space<vmem>>, vector<8x256xf32>,
    } else {
    }
    %c0_i32_3 = arith.constant 0 : i32
    %9 = arith.cmpi sgt, %arg1, %c0_i32_3 : i32
    %10 = arith.extui %9 : i1 to i32
    %c0_i32_4 = arith.constant 0 : i32
    %11 = arith.cmpi ne, %10, %c0_i32_4 : i32
    scf.if %11 {
      %c0_5 = arith.constant 0 : index
      %c0_6 = arith.constant 0 : index
      %12 = vector.load %arg4[%c0_5, %c0_6] : memref<8x256xf32, #tpu.memory_space<vmem>>, vector<8x256xf32>
      %13 = arith.addf %12, %5 : vector<8x256xf32>
      %c0_7 = arith.constant 0 : index
      %c0_8 = arith.constant 0 : index
      %14 = vector.load %arg4[%c0_7, %c0_8] : memref<8x256xf32, #tpu.memory_space<vmem>>, vector<8x256xf32>
      tpu.vector_store %arg4[%c0_7, %c0_8], %13 {strides = array<i32>} : memref<8x256xf32, #tpu.memory_space<vmem>>, vector<8x256xf32>,
    } else {
    }
    return
  }
  func.func @transform_0(%arg0: i32, %arg1: i32) -> (i32, i32) {
    %c0_i32 = arith.constant 0 : i32
    %c0_i32_0 = arith.constant 0 : i32
    %c0_i32_1 = arith.constant 0 : i32
    return %c0_i32, %c0_i32_0 : i32, i32
  }
  func.func @transform_1(%arg0: i32, %arg1: i32) -> (i32, i32) {
    %c0_i32 = arith.constant 0 : i32
    return %arg1, %arg0 : i32, i32
  }
  func.func @transform_2(%arg0: i32, %arg1: i32) -> (i32, i32) {
    %c0_i32 = arith.constant 0 : i32
    %c0_i32_0 = arith.constant 0 : i32
    return %c0_i32, %arg0 : i32, i32
  }
}

</mosaic_0001>

<llo_original>
// kernel: tpu_custom_call.1
$region0: #{tpu_custom_call.1}
  #allocation0 [shape = 'u32[]', space=smem, size = 0x4, offset = 0x4, fixed_abs, tag = 'smem constant byte address 0x4 - core index']
  #allocation1 [shape = 'u32[72,128]{1,0:T(1,128)}', space=vmem, size = 0x9000, scoped, tag = 'internal scratch']
  %s0 = inlined_call_operand.hbm [shape: bf16[8,384], index: 0, kind: input, shape index: {}]
  %s1 = inlined_call_operand.hbm [shape: bf16[384,256], index: 1, kind: input, shape index: {}]
  %s2 = inlined_call_operand.hbm [shape: f32[8,256], index: 2, kind: output, shape index: {}]
  %s3 = sld [smem:[#allocation0]]
  $region34: #{tpu_custom_call.1} parent=0
    _
  %s5 = ssub.s32 1, %s3
  %s6 = scalar_select 0, %s5, %s3
  $region1: #{tpu_custom_call.1} parent=0
    #allocation2 [shape = 'u8[6144]{0}', space=vmem, size = 0x1800, scoped, tag = 'input window, operand 0, single buffered']
    #allocation3 [shape = 's32[1]{0}', space=sflag, size = 0x4, scoped, tag = 'scoped memory for tpu_custom_call.1']
    #allocation4 [shape = 's32[1]{0}', space=sflag, size = 0x4, scoped, tag = 'scoped memory for tpu_custom_call.1']
    #allocation5 [shape = 'u8[196608]{0}', space=vmem, size = 0x30000, scoped, tag = 'input window, operand 1, single buffered']
    #allocation6 [shape = 's32[1]{0}', space=sflag, size = 0x4, scoped, tag = 'scoped memory for tpu_custom_call.1']
    #allocation7 [shape = 'u8[8192]{0}', space=vmem, size = 0x2000, scoped, tag = 'output window, operand 0, single buffered']
    %7 = vsyncpa [#allocation3], 0
    %8 = vsyncpa [#allocation6], 0
    %9 = vsyncpa [#allocation4], 0
    // Predicated region
    $region2: #{tpu_custom_call.1} parent=1 // pred_check
      _
    $region3: #{tpu_custom_call.1} parent=1 // pred_check_branch
      %11 = sbr.rel (0) target = $region5
    $region4: #{tpu_custom_call.1} parent=1 // pred_region
      %13 = vsyncadd [#allocation3], 0
      %s15 = sshll.u32 %s0, 4
      %s16 = int_to_ptr.hbm [resolvable:$true] %s15
      %s17 = sshll.u32 [#allocation2], 4
      %s18 = int_to_ptr.vmem [resolvable:$true] %s17
      %20 = dma.hbm_to_vmem [thread:$0]  %s16, 192, %s18, [#allocation3]
    $region5: #{tpu_custom_call.1} parent=1 // pred_fallthru
      _
    // Predicated region
    $region6: #{tpu_custom_call.1} parent=1 // pred_check
      _
    $region7: #{tpu_custom_call.1} parent=1 // pred_check_branch
      %22 = sbr.rel (0) target = $region9
    $region8: #{tpu_custom_call.1} parent=1 // pred_region
      %24 = vsyncadd [#allocation6], 0
      %s25 = sshll.u32 %s1, 4
      %s26 = int_to_ptr.hbm [resolvable:$true] %s25
      %s27 = sshll.u32 [#allocation5], 4
      %s28 = int_to_ptr.vmem [resolvable:$true] %s27
      %33 = dma.hbm_to_vmem [thread:$0]  %s26, 6144, %s28, [#allocation6], 128, 128, 8
    $region9: #{tpu_custom_call.1} parent=1 // pred_fallthru
      _
    // Predicated region
    $region10: #{tpu_custom_call.1} parent=1 // pred_check
      _
    $region11: #{tpu_custom_call.1} parent=1 // pred_check_branch
      %35 = sbr.rel (0) target = $region13
    $region12: #{tpu_custom_call.1} parent=1 // pred_region
      %37 = dma.done [#allocation3], 192
    $region13: #{tpu_custom_call.1} parent=1 // pred_fallthru
      _
    // Predicated region
    $region14: #{tpu_custom_call.1} parent=1 // pred_check
      _
    $region15: #{tpu_custom_call.1} parent=1 // pred_check_branch
      %39 = sbr.rel (0) target = $region17
    $region16: #{tpu_custom_call.1} parent=1 // pred_region
      %41 = dma.done [#allocation6], 6144
    $region17: #{tpu_custom_call.1} parent=1 // pred_fallthru
      _
    %s42 = smul.u32 0, 384
    %s43 = sshra.s32 %s42, 7
    %s44 = sand.u32 %s42, 127
    %s45 = smul.addr %s43, 4
    %s46 = scalar_lea.vmem [#allocation2], %s45
    %v47 = vld [vmem:[%s46] sm:$0xff]
    %v48 = vld [vmem:[%s46 + $0x8] sm:$0xf]
    %v49 = vld [vmem:[#allocation5] sm:$0xff]
    %v50 = vld [vmem:[#allocation5 + $0x8] sm:$0xff]
    %v51 = vld [vmem:[#allocation5 + $0x10] sm:$0xff]
    %v52 = vld [vmem:[#allocation5 + $0x18] sm:$0xff]
    %v53 = vld [vmem:[#allocation5 + $0x20] sm:$0xff]
    %v54 = vld [vmem:[#allocation5 + $0x28] sm:$0xff]
    %v55 = vld [vmem:[#allocation5 + $0x30] sm:$0xff]
    %v56 = vld [vmem:[#allocation5 + $0x38] sm:$0xff]
    %v57 = vld [vmem:[#allocation5 + $0x40] sm:$0xff]
    %v58 = vld [vmem:[#allocation5 + $0x48] sm:$0xff]
    %v59 = vld [vmem:[#allocation5 + $0x50] sm:$0xff]
    %v60 = vld [vmem:[#allocation5 + $0x58] sm:$0xff]
    %v61 = vld [vmem:[#allocation5 + $0x60] sm:$0xff]
    %v62 = vld [vmem:[#allocation5 + $0x68] sm:$0xff]
    %v63 = vld [vmem:[#allocation5 + $0x70] sm:$0xff]
    %v64 = vld [vmem:[#allocation5 + $0x78] sm:$0xff]
    %v65 = vld [vmem:[#allocation5 + $0x80] sm:$0xff]
    %v66 = vld [vmem:[#allocation5 + $0x88] sm:$0xff]
    %v67 = vld [vmem:[#allocation5 + $0x90] sm:$0xff]
    %v68 = vld [vmem:[#allocation5 + $0x98] sm:$0xff]
    %v69 = vld [vmem:[#allocation5 + $0xa0] sm:$0xff]
    %v70 = vld [vmem:[#allocation5 + $0xa8] sm:$0xff]
    %v71 = vld [vmem:[#allocation5 + $0xb0] sm:$0xff]
    %v72 = vld [vmem:[#allocation5 + $0xb8] sm:$0xff]
    %v73 = vld [vmem:[#allocation5 + $0xc0] sm:$0xff]
    %v74 = vld [vmem:[#allocation5 + $0xc8] sm:$0xff]
    %v75 = vld [vmem:[#allocation5 + $0xd0] sm:$0xff]
    %v76 = vld [vmem:[#allocation5 + $0xd8] sm:$0xff]
    %v77 = vld [vmem:[#allocation5 + $0xe0] sm:$0xff]
    %v78 = vld [vmem:[#allocation5 + $0xe8] sm:$0xff]
    %v79 = vld [vmem:[#allocation5 + $0xf0] sm:$0xff]
    %v80 = vld [vmem:[#allocation5 + $0xf8] sm:$0xff]
    %v81 = vld [vmem:[#allocation5 + $0x100] sm:$0xff]
    %v82 = vld [vmem:[#allocation5 + $0x108] sm:$0xff]
    %v83 = vld [vmem:[#allocation5 + $0x110] sm:$0xff]
    %v84 = vld [vmem:[#allocation5 + $0x118] sm:$0xff]
    %v85 = vld [vmem:[#allocation5 + $0x120] sm:$0xff]
    %v86 = vld [vmem:[#allocation5 + $0x128] sm:$0xff]
    %v87 = vld [vmem:[#allocation5 + $0x130] sm:$0xff]
    %v88 = vld [vmem:[#allocation5 + $0x138] sm:$0xff]
    %v89 = vld [vmem:[#allocation5 + $0x140] sm:$0xff]
    %v90 = vld [vmem:[#allocation5 + $0x148] sm:$0xff]
    %v91 = vld [vmem:[#allocation5 + $0x150] sm:$0xff]
    %v92 = vld [vmem:[#allocation5 + $0x158] sm:$0xff]
    %v93 = vld [vmem:[#allocation5 + $0x160] sm:$0xff]
    %v94 = vld [vmem:[#allocation5 + $0x168] sm:$0xff]
    %v95 = vld [vmem:[#allocation5 + $0x170] sm:$0xff]
    %v96 = vld [vmem:[#allocation5 + $0x178] sm:$0xff]
    %v99 = vunpack.c.l.b16 %v47
    %v100 = vunpack.c.h.b16 %v47
    %v101 = vunpack.c.l.b16 %v48
    %v102 = vpack.c.b16 %v99, %v99
    %v103 = vpack.c.b16 %v100, %v100
    %v104 = vpack.c.b16 %v101, %v101
    %v156 = vunpack.c.l.b16 %v49
    %v157 = vunpack.c.h.b16 %v49
    %v158 = vunpack.c.l.b16 %v50
    %v159 = vunpack.c.h.b16 %v50
    %v160 = vunpack.c.l.b16 %v51
    %v161 = vunpack.c.h.b16 %v51
    %v162 = vunpack.c.l.b16 %v52
    %v163 = vunpack.c.h.b16 %v52
    %v164 = vunpack.c.l.b16 %v53
    %v165 = vunpack.c.h.b16 %v53
    %v166 = vunpack.c.l.b16 %v54
    %v167 = vunpack.c.h.b16 %v54
    %v168 = vunpack.c.l.b16 %v55
    %v169 = vunpack.c.h.b16 %v55
    %v170 = vunpack.c.l.b16 %v56
    %v171 = vunpack.c.h.b16 %v56
    %v172 = vunpack.c.l.b16 %v57
    %v173 = vunpack.c.h.b16 %v57
    %v174 = vunpack.c.l.b16 %v58
    %v175 = vunpack.c.h.b16 %v58
    %v176 = vunpack.c.l.b16 %v59
    %v177 = vunpack.c.h.b16 %v59
    %v178 = vunpack.c.l.b16 %v60
    %v179 = vunpack.c.h.b16 %v60
    %v180 = vunpack.c.l.b16 %v61
    %v181 = vunpack.c.h.b16 %v61
    %v182 = vunpack.c.l.b16 %v62
    %v183 = vunpack.c.h.b16 %v62
    %v184 = vunpack.c.l.b16 %v63
    %v185 = vunpack.c.h.b16 %v63
    %v186 = vunpack.c.l.b16 %v64
    %v187 = vunpack.c.h.b16 %v64
    %v188 = vunpack.c.l.b16 %v65
    %v189 = vunpack.c.h.b16 %v65
    %v190 = vunpack.c.l.b16 %v66
    %v191 = vunpack.c.h.b16 %v66
    %v192 = vunpack.c.l.b16 %v67
    %v193 = vunpack.c.h.b16 %v67
    %v194 = vunpack.c.l.b16 %v68
    %v195 = vunpack.c.h.b16 %v68
    %v196 = vunpack.c.l.b16 %v69
    %v197 = vunpack.c.h.b16 %v69
    %v198 = vunpack.c.l.b16 %v70
    %v199 = vunpack.c.h.b16 %v70
    %v200 = vunpack.c.l.b16 %v71
    %v201 = vunpack.c.h.b16 %v71
    %v202 = vunpack.c.l.b16 %v72
    %v203 = vunpack.c.h.b16 %v72
    %v204 = vunpack.c.l.b16 %v73
    %v205 = vunpack.c.h.b16 %v73
    %v206 = vunpack.c.l.b16 %v74
    %v207 = vunpack.c.h.b16 %v74
    %v208 = vunpack.c.l.b16 %v75
    %v209 = vunpack.c.h.b16 %v75
    %v210 = vunpack.c.l.b16 %v76
    %v211 = vunpack.c.h.b16 %v76
    %v212 = vunpack.c.l.b16 %v77
    %v213 = vunpack.c.h.b16 %v77
    %v214 = vunpack.c.l.b16 %v78
    %v215 = vunpack.c.h.b16 %v78
    %v216 = vunpack.c.l.b16 %v79
    %v217 = vunpack.c.h.b16 %v79
    %v218 = vunpack.c.l.b16 %v80
    %v219 = vunpack.c.h.b16 %v80
    %v220 = vunpack.c.l.b16 %v81
    %v221 = vunpack.c.h.b16 %v81
    %v222 = vunpack.c.l.b16 %v82
    %v223 = vunpack.c.h.b16 %v82
    %v224 = vunpack.c.l.b16 %v83
    %v225 = vunpack.c.h.b16 %v83
    %v226 = vunpack.c.l.b16 %v84
    %v227 = vunpack.c.h.b16 %v84
    %v228 = vunpack.c.l.b16 %v85
    %v229 = vunpack.c.h.b16 %v85
    %v230 = vunpack.c.l.b16 %v86
    %v231 = vunpack.c.h.b16 %v86
    %v232 = vunpack.c.l.b16 %v87
    %v233 = vunpack.c.h.b16 %v87
    %v234 = vunpack.c.l.b16 %v88
    %v235 = vunpack.c.h.b16 %v88
    %v236 = vunpack.c.l.b16 %v89
    %v237 = vunpack.c.h.b16 %v89
    %v238 = vunpack.c.l.b16 %v90
    %v239 = vunpack.c.h.b16 %v90
    %v240 = vunpack.c.l.b16 %v91
    %v241 = vunpack.c.h.b16 %v91
    %v242 = vunpack.c.l.b16 %v92
    %v243 = vunpack.c.h.b16 %v92
    %v244 = vunpack.c.l.b16 %v93
    %v245 = vunpack.c.h.b16 %v93
    %v246 = vunpack.c.l.b16 %v94
    %v247 = vunpack.c.h.b16 %v94
    %v248 = vunpack.c.l.b16 %v95
    %v249 = vunpack.c.h.b16 %v95
    %v250 = vunpack.c.l.b16 %v96
    %v251 = vunpack.c.h.b16 %v96
    %v252 = vpack.c.b16 %v158, %v156
    %v253 = vpack.c.b16 %v159, %v157
    %v254 = vpack.c.b16 %v162, %v160
    %v255 = vpack.c.b16 %v163, %v161
    %v256 = vpack.c.b16 %v166, %v164
    %v257 = vpack.c.b16 %v167, %v165
    %v258 = vpack.c.b16 %v170, %v168
    %v259 = vpack.c.b16 %v171, %v169
    %v260 = vpack.c.b16 %v174, %v172
    %v261 = vpack.c.b16 %v175, %v173
    %v262 = vpack.c.b16 %v178, %v176
    %v263 = vpack.c.b16 %v179, %v177
    %v264 = vpack.c.b16 %v182, %v180
    %v265 = vpack.c.b16 %v183, %v181
    %v266 = vpack.c.b16 %v186, %v184
    %v267 = vpack.c.b16 %v187, %v185
    %v268 = vpack.c.b16 %v190, %v188
    %v269 = vpack.c.b16 %v191, %v189
    %v270 = vpack.c.b16 %v194, %v192
    %v271 = vpack.c.b16 %v195, %v193
    %v272 = vpack.c.b16 %v198, %v196
    %v273 = vpack.c.b16 %v199, %v197
    %v274 = vpack.c.b16 %v202, %v200
    %v275 = vpack.c.b16 %v203, %v201
    %v276 = vpack.c.b16 %v206, %v204
    %v277 = vpack.c.b16 %v207, %v205
    %v278 = vpack.c.b16 %v210, %v208
    %v279 = vpack.c.b16 %v211, %v209
    %v280 = vpack.c.b16 %v214, %v212
    %v281 = vpack.c.b16 %v215, %v213
    %v282 = vpack.c.b16 %v218, %v216
    %v283 = vpack.c.b16 %v219, %v217
    %v284 = vpack.c.b16 %v222, %v220
    %v285 = vpack.c.b16 %v223, %v221
    %v286 = vpack.c.b16 %v226, %v224
    %v287 = vpack.c.b16 %v227, %v225
    %v288 = vpack.c.b16 %v230, %v228
    %v289 = vpack.c.b16 %v231, %v229
    %v290 = vpack.c.b16 %v234, %v232
    %v291 = vpack.c.b16 %v235, %v233
    %v292 = vpack.c.b16 %v238, %v236
    %v293 = vpack.c.b16 %v239, %v237
    %v294 = vpack.c.b16 %v242, %v240
    %v295 = vpack.c.b16 %v243, %v241
    %v296 = vpack.c.b16 %v246, %v244
    %v297 = vpack.c.b16 %v247, %v245
    %v298 = vpack.c.b16 %v250, %v248
    %v299 = vpack.c.b16 %v251, %v249
    %348 = vmatpush.bf16.msra.mxu0 %v266
    %349 = vmatpush.bf16.msra.mxu0 %v264
    %350 = vmatpush.bf16.msra.mxu0 %v262
    %351 = vmatpush.bf16.msra.mxu0 %v260
    %352 = vmatpush.bf16.msra.mxu0 %v258
    %353 = vmatpush.bf16.msra.mxu0 %v256
    %354 = vmatpush.bf16.msra.mxu0 %v254
    %355 = vmatpush.bf16.msra.mxu0 %v252
    %356 = vmatmul.bf16.gmra.mxu0 %v102
    %v357 = vpop.f32.mrf.mxu0
    %v358 = vadd.f32 0.0, %v357
    %v359 = vpop.f32.mrf.mxu0
    %360 = vdwg.mxu0
    %361 = vmatpush.bf16.msra.mxu0 %v282
    %362 = vmatpush.bf16.msra.mxu0 %v280
    %363 = vmatpush.bf16.msra.mxu0 %v278
    %364 = vmatpush.bf16.msra.mxu0 %v276
    %365 = vmatpush.bf16.msra.mxu0 %v274
    %366 = vmatpush.bf16.msra.mxu0 %v272
    %367 = vmatpush.bf16.msra.mxu0 %v270
    %368 = vmatpush.bf16.msra.mxu0 %v268
    %369 = vmatmul.bf16.gmra.mxu0 %v103
    %v370 = vpop.f32.mrf.mxu0
    %v371 = vadd.f32 %v358, %v370
    %v372 = vpop.f32.mrf.mxu0
    %373 = vdwg.mxu0
    %374 = vmatpush.bf16.msra.mxu0 %v298
    %375 = vmatpush.bf16.msra.mxu0 %v296
    %376 = vmatpush.bf16.msra.mxu0 %v294
    %377 = vmatpush.bf16.msra.mxu0 %v292
    %378 = vmatpush.bf16.msra.mxu0 %v290
    %379 = vmatpush.bf16.msra.mxu0 %v288
    %380 = vmatpush.bf16.msra.mxu0 %v286
    %381 = vmatpush.bf16.msra.mxu0 %v284
    %382 = vmatmul.bf16.gmra.mxu0 %v104
    %v383 = vpop.f32.mrf.mxu0
    %v384 = vadd.f32 %v371, %v383
    %v385 = vpop.f32.mrf.mxu0
    %386 = vdwg.mxu0
    %387 = vmatpush.bf16.msra.mxu0 %v267
    %388 = vmatpush.bf16.msra.mxu0 %v265
    %389 = vmatpush.bf16.msra.mxu0 %v263
    %390 = vmatpush.bf16.msra.mxu0 %v261
    %391 = vmatpush.bf16.msra.mxu0 %v259
    %392 = vmatpush.bf16.msra.mxu0 %v257
    %393 = vmatpush.bf16.msra.mxu0 %v255
    %394 = vmatpush.bf16.msra.mxu0 %v253
    %395 = vmatmul.bf16.gmra.mxu0 %v102
    %v396 = vpop.f32.mrf.mxu0
    %v397 = vadd.f32 0.0, %v396
    %v398 = vpop.f32.mrf.mxu0
    %399 = vdwg.mxu0
    %400 = vmatpush.bf16.msra.mxu0 %v283
    %401 = vmatpush.bf16.msra.mxu0 %v281
    %402 = vmatpush.bf16.msra.mxu0 %v279
    %403 = vmatpush.bf16.msra.mxu0 %v277
    %404 = vmatpush.bf16.msra.mxu0 %v275
    %405 = vmatpush.bf16.msra.mxu0 %v273
    %406 = vmatpush.bf16.msra.mxu0 %v271
    %407 = vmatpush.bf16.msra.mxu0 %v269
    %408 = vmatmul.bf16.gmra.mxu0 %v103
    %v409 = vpop.f32.mrf.mxu0
    %v410 = vadd.f32 %v397, %v409
    %v411 = vpop.f32.mrf.mxu0
    %412 = vdwg.mxu0
    %413 = vmatpush.bf16.msra.mxu0 %v299
    %414 = vmatpush.bf16.msra.mxu0 %v297
    %415 = vmatpush.bf16.msra.mxu0 %v295
    %416 = vmatpush.bf16.msra.mxu0 %v293
    %417 = vmatpush.bf16.msra.mxu0 %v291
    %418 = vmatpush.bf16.msra.mxu0 %v289
    %419 = vmatpush.bf16.msra.mxu0 %v287
    %420 = vmatpush.bf16.msra.mxu0 %v285
    %421 = vmatmul.bf16.gmra.mxu0 %v104
    %v422 = vpop.f32.mrf.mxu0
    %v423 = vadd.f32 %v410, %v422
    %v424 = vpop.f32.mrf.mxu0
    %425 = vdwg.mxu0
    %p426 = scmp.eq.s32.totalorder 0, 0
    // Predicated region
    $region18: #{tpu_custom_call.1} parent=1 // pred_check
      %p427 = pneg %p426
    $region19: #{tpu_custom_call.1} parent=1 // pred_check_branch
      %429 = sbr.rel (%p427) target = $region21
    $region20: #{tpu_custom_call.1} parent=1 // pred_region
      %430 = vst [vmem:[#allocation7] sm:$0xff] %v384
      %431 = vst [vmem:[#allocation7 + $0x8] sm:$0xff] %v423
    $region21: #{tpu_custom_call.1} parent=1 // pred_fallthru
      _
    %p432 = scmp.gt.s32.totalorder 0, 0
    // Predicated region
    $region22: #{tpu_custom_call.1} parent=1 // pred_check
      %p433 = pneg %p432
    $region23: #{tpu_custom_call.1} parent=1 // pred_check_branch
      %435 = sbr.rel (%p433) target = $region25
    $region24: #{tpu_custom_call.1} parent=1 // pred_region
      %v436 = vld [vmem:[#allocation7] sm:$0xff]
      %v437 = vld [vmem:[#allocation7 + $0x8] sm:$0xff]
      %v438 = vadd.f32 %v436, %v384
      %v439 = vadd.f32 %v437, %v423
      %440 = vst [vmem:[#allocation7] sm:$0xff] %v438
      %441 = vst [vmem:[#allocation7 + $0x8] sm:$0xff] %v439
    $region25: #{tpu_custom_call.1} parent=1 // pred_fallthru
      _
    // Predicated region
    $region26: #{tpu_custom_call.1} parent=1 // pred_check
      _
    $region27: #{tpu_custom_call.1} parent=1 // pred_check_branch
      %443 = sbr.rel (0) target = $region29
    $region28: #{tpu_custom_call.1} parent=1 // pred_region
      %445 = vsyncadd [#allocation4], 0
      %s447 = sshll.u32 [#allocation7], 4
      %s448 = int_to_ptr.vmem [resolvable:$true] %s447
      %s449 = sshll.u32 %s2, 4
      %s450 = int_to_ptr.hbm [resolvable:$true] %s449
      %452 = dma.vmem_to_hbm [thread:$0]  %s448, 256, %s450, [#allocation4]
    $region29: #{tpu_custom_call.1} parent=1 // pred_fallthru
      _
    // Predicated region
    $region30: #{tpu_custom_call.1} parent=1 // pred_check
      _
    $region31: #{tpu_custom_call.1} parent=1 // pred_check_branch
      %454 = sbr.rel (0) target = $region33
    $region32: #{tpu_custom_call.1} parent=1 // pred_region
      %456 = dma.done [#allocation4], 256
    $region33: #{tpu_custom_call.1} parent=1 // pred_fallthru
      _
    %457 = vsyncpa [#allocation3], 1
    %458 = vsyncpa [#allocation6], 1
    %459 = vsyncpa [#allocation4], 1

</llo_original>
